<compile_context>
chip_gen: v6e
topology: v6e:2x2x1
jax: 0.10.0
libtpu: 0.0.40
codegen_flags: <defaults>
</compile_context>

<pallas_src>
import functools

import jax
import jax.numpy as jnp
from jax.experimental import pallas as pl
from jax.experimental.pallas import tpu as pltpu


def _round_up(x, m):
    return (x + m - 1) // m * m


def _global_sa_kernel(n_points, tile_n, tiles_per_split, num_batches, final_relu,
                      bmin_ref, bmax_ref,
                      x_ref, pos_ref, batch_ref,
                      w1x_ref, w1p_ref, b1_ref,
                      w2_ref, b2_ref, w3_ref, b3_ref,
                      out_ref, acc_ref):
    """One N-tile: split-MLP(x, pos) + fold per-graph max into running accumulator."""
    split = pl.program_id(0)
    step = pl.program_id(1)
    tile = split * tiles_per_split + step          # logical tile index

    @pl.when(step == 0)
    def _init():
        acc_ref[...] = jnp.full_like(acc_ref, -jnp.inf)

    # ---- MLP: bf16 matmuls on the MXU, f32 bias / ReLU on the VPU ----------
    xb = x_ref[...].astype(jnp.bfloat16)           # (TN, Cx)
    pb = pos_ref[...].astype(jnp.bfloat16)         # (TN, 3)
    h = (jnp.dot(xb, w1x_ref[...], preferred_element_type=jnp.float32)
         + jnp.dot(pb, w1p_ref[...], preferred_element_type=jnp.float32)
         + b1_ref[...])
    h = jnp.maximum(h, 0.0)
    h = jnp.dot(h.astype(jnp.bfloat16), w2_ref[...],
                preferred_element_type=jnp.float32) + b2_ref[...]
    h = jnp.maximum(h, 0.0)
    h = jnp.dot(h.astype(jnp.bfloat16), w3_ref[...],
                preferred_element_type=jnp.float32) + b3_ref[...]
    if final_relu:
        h = jnp.maximum(h, 0.0)                    # (TN, Cout_p) f32

    # ---- global_max_pool: masked per-graph max into (B_pad, Cout_p) scratch ----
    # Row-validity mask covers the ragged tail / phantom tiles (no N padding in HBM).
    row = tile * tile_n + jax.lax.broadcasted_iota(jnp.int32, (tile_n, 1), 0)
    valid = row < n_points                          # (TN, 1) bool
    bidx = batch_ref[...]                           # (TN, 1) int32
    neg_inf = jnp.float32(-jnp.inf)

    bmin = bmin_ref[tile]                           # SMEM scalars (prefetched)
    bmax = bmax_ref[tile]
    # Static loop over graph ids; pl.when skips all work for graphs not present in
    # this tile (batch ids are contiguous, so typically only 1-2 iterations run).
    # TODO(synk): for very large B, switch to a lax.fori_loop over [bmin, bmax].
    for b in range(num_batches):
        @pl.when(jnp.logical_and(bmin <= b, b <= bmax))
        def _update(b=b):
            masked = jnp.where(jnp.logical_and(valid, bidx == b), h, neg_inf)
            tile_max = jnp.max(masked, axis=0, keepdims=True)       # (1, Cout_p)
            acc_ref[pl.ds(b, 1), :] = jnp.maximum(acc_ref[pl.ds(b, 1), :], tile_max)

    @pl.when(step == pl.num_programs(1) - 1)
    def _finalize():
        out_ref[0] = acc_ref[...]                   # unmasked (B_pad, 128) store


def init_mlp_params(key, c_in, hidden, c_out):
    """Deterministic Linear weights/biases for MLP([c_in, hidden, hidden, c_out])."""
    k1, k2, k3, k4, k5, k6 = jax.random.split(key, 6)
    scale = 0.1
    w1 = scale * jax.random.normal(k1, (c_in, hidden), jnp.float32)
    b1 = scale * jax.random.normal(k2, (hidden,), jnp.float32)
    w2 = scale * jax.random.normal(k3, (hidden, hidden), jnp.float32)
    b2 = scale * jax.random.normal(k4, (hidden,), jnp.float32)
    w3 = scale * jax.random.normal(k5, (hidden, c_out), jnp.float32)
    b3 = scale * jax.random.normal(k6, (c_out,), jnp.float32)
    return (w1, b1, w2, b2, w3, b3)


def global_sa_module(x, pos, batch, params, num_batches, *,
                     tile_n=2048, final_relu=False):
    """Forward pass of GlobalSAModule.

    Args:
      x:     (N, Cx) float32 point features
      pos:   (N, 3)  float32 point positions
      batch: (N,)    int32 batch assignment in [0, num_batches) (contiguous ids)
      params: MLP parameters (w1, b1, w2, b2, w3, b3), w1 has Cx+3 rows
      num_batches: static number of point clouds in the batch
      tile_n: target rows per grid step (multiple of 8; clipped for small N)
      final_relu: apply ReLU after the last Linear (torch_geometric MLP default
                  is plain_last=True, i.e. no final activation)

    Returns:
      (x_out (B, Cout), pos_out (B, 3) zeros, batch_out (B,) arange)
    """
    w1, b1, w2, b2, w3, b3 = params
    c_in, hidden = w1.shape
    c_out = w3.shape[1]
    n, cx = x.shape
    assert c_in == cx + 3, "w1 must take cat([x, pos]) channels"
    assert tile_n % 8 == 0

    LANE = 128
    h_p = _round_up(hidden, LANE)
    c_out_p = _round_up(c_out, LANE)
    b_pad = _round_up(max(num_batches, 1), 8)

    tn = min(tile_n, _round_up(n, 8))
    num_real_tiles = pl.cdiv(n, tn)
    n_split = 2 if num_real_tiles >= 2 else 1       # v7x: one half per TensorCore
    tiles_per_split = pl.cdiv(num_real_tiles, n_split)
    num_tiles = n_split * tiles_per_split
    max_block = num_real_tiles - 1                  # clamp for phantom tiles

    # ---- per-tile batch-id ranges (tiny pass over the 4-byte ids only) -----
    batch_i32 = batch.astype(jnp.int32)
    pad_rows = num_real_tiles * tn - n
    bmin_src = jnp.pad(batch_i32, (0, pad_rows), constant_values=num_batches)
    bmax_src = jnp.pad(batch_i32, (0, pad_rows), constant_values=-1)
    tile_bmin = bmin_src.reshape(num_real_tiles, tn).min(axis=1)
    tile_bmax = bmax_src.reshape(num_real_tiles, tn).max(axis=1)
    if num_tiles > num_real_tiles:
        extra = num_tiles - num_real_tiles
        tile_bmin = jnp.concatenate(
            [tile_bmin, jnp.full((extra,), num_batches, jnp.int32)])
        tile_bmax = jnp.concatenate(
            [tile_bmax, jnp.full((extra,), -1, jnp.int32)])

    # ---- tiny weight padding / bf16 cast (weights only; negligible bytes) --
    w1x = jnp.zeros((cx, h_p), jnp.float32).at[:, :hidden].set(w1[:cx]).astype(jnp.bfloat16)
    w1p = jnp.zeros((3, h_p), jnp.float32).at[:, :hidden].set(w1[cx:]).astype(jnp.bfloat16)
    b1_p = jnp.zeros((1, h_p), jnp.float32).at[0, :hidden].set(b1)
    w2_p = jnp.zeros((h_p, h_p), jnp.float32).at[:hidden, :hidden].set(w2).astype(jnp.bfloat16)
    b2_p = jnp.zeros((1, h_p), jnp.float32).at[0, :hidden].set(b2)
    w3_p = jnp.zeros((h_p, c_out_p), jnp.float32).at[:hidden, :c_out].set(w3).astype(jnp.bfloat16)
    b3_p = jnp.zeros((1, c_out_p), jnp.float32).at[0, :c_out].set(b3)

    batch2d = batch_i32.reshape(n, 1)

    kernel = functools.partial(_global_sa_kernel, n, tn, tiles_per_split,
                               num_batches, final_relu)

    def row_block(c, i, bmin, bmax):
        t = c * tiles_per_split + i
        return (jnp.minimum(t, max_block), 0)       # clamp phantom tiles in-bounds

    def const(c, i, bmin, bmax):                    # weights stay resident in VMEM
        return (0, 0)

    cost = pl.CostEstimate(
        flops=2 * n * ((cx + 3) * h_p + h_p * h_p + h_p * c_out_p),
        transcendentals=0,
        bytes_accessed=(n * ((cx + 3) * 4 + 4)
                        + 2 * (cx * h_p + 3 * h_p + h_p * h_p + h_p * c_out_p)
                        + 4 * (2 * h_p + c_out_p)
                        + n_split * b_pad * c_out_p * 4),
    )

    out = pl.pallas_call(
        kernel,
        out_shape=jax.ShapeDtypeStruct((n_split, b_pad, c_out_p), jnp.float32),
        grid_spec=pltpu.PrefetchScalarGridSpec(
            num_scalar_prefetch=2,                  # tile_bmin, tile_bmax -> SMEM
            grid=(n_split, tiles_per_split),
            in_specs=[
                pl.BlockSpec((tn, cx), row_block),       # x tile (unpadded)
                pl.BlockSpec((tn, 3), row_block),        # pos tile (unpadded)
                pl.BlockSpec((tn, 1), row_block),        # batch ids tile
                pl.BlockSpec((cx, h_p), const),          # w1 (x part), resident
                pl.BlockSpec((3, h_p), const),           # w1 (pos part)
                pl.BlockSpec((1, h_p), const),           # b1
                pl.BlockSpec((h_p, h_p), const),         # w2
                pl.BlockSpec((1, h_p), const),           # b2
                pl.BlockSpec((h_p, c_out_p), const),     # w3
                pl.BlockSpec((1, c_out_p), const),       # b3
            ],
            out_specs=pl.BlockSpec((1, b_pad, c_out_p),
                                   lambda c, i, bmin, bmax: (c, 0, 0)),
            scratch_shapes=[pltpu.VMEM((b_pad, c_out_p), jnp.float32)],
        ),
        compiler_params=pltpu.CompilerParams(
            dimension_semantics=("parallel", "arbitrary"),
        ),
        cost_estimate=cost,
    )(tile_bmin, tile_bmax,
      x.astype(jnp.float32), pos.astype(jnp.float32), batch2d,
      w1x, w1p, b1_p, w2_p, b2_p, w3_p, b3_p)

    x_out = jnp.max(out, axis=0)[:num_batches, :c_out]   # combine splits, strip pad
    pos_out = jnp.zeros((num_batches, 3), dtype=pos.dtype)
    batch_out = jnp.arange(num_batches, dtype=jnp.int32)
    return x_out, pos_out, batch_out


def _reference(x, pos, batch, params, num_batches, final_relu=False):
    """Pure-JAX (f32) reference of the same forward pass."""
    w1, b1, w2, b2, w3, b3 = params
    h = jnp.concatenate([x, pos], axis=1)
    h = jnp.maximum(h @ w1 + b1, 0.0)
    h = jnp.maximum(h @ w2 + b2, 0.0)
    h = h @ w3 + b3
    if final_relu:
        h = jnp.maximum(h, 0.0)
    out = jnp.full((num_batches, h.shape[1]), -jnp.inf, jnp.float32)
    out = out.at[batch].max(h)
    return out


if __name__ == "__main__":
    key = jax.random.PRNGKey(0)
    kx1, kp1, kw, kx2, kp2 = jax.random.split(key, 5)

    CX, H, COUT = 4, 32, 32
    params = init_mlp_params(kw, CX + 3, H, COUT)

    # ---- Case 1: small, single tile -----------------------------------------
    N1, B1 = 16, 2
    x1 = jax.random.normal(kx1, (N1, CX), jnp.float32)
    pos1 = jax.random.normal(kp1, (N1, 3), jnp.float32)
    batch1 = jnp.repeat(jnp.arange(B1, dtype=jnp.int32), N1 // B1)

    x_out1, pos_out1, batch_out1 = global_sa_module(x1, pos1, batch1, params, B1)
    jax.block_until_ready((x_out1, pos_out1, batch_out1))
    ref1 = _reference(x1, pos1, batch1, params, B1)
    assert x_out1.shape == (B1, COUT)
    assert pos_out1.shape == (B1, 3) and bool(jnp.all(pos_out1 == 0))
    assert jnp.array_equal(batch_out1, jnp.arange(B1, dtype=jnp.int32))
    assert jnp.allclose(x_out1, ref1, atol=5e-2, rtol=5e-2), \
        f"case1 max abs err = {jnp.max(jnp.abs(x_out1 - ref1))}"

    # ---- Case 2: multi-tile, ragged tail, uneven graphs, 2-way split --------
    N2, B2 = 2000, 3
    x2 = jax.random.normal(kx2, (N2, CX), jnp.float32)
    pos2 = jax.random.normal(kp2, (N2, 3), jnp.float32)
    sizes = jnp.array([700, 800, 500], jnp.int32)
    batch2 = jnp.repeat(jnp.arange(B2, dtype=jnp.int32), sizes,
                        total_repeat_length=N2)

    x_out2, _, _ = global_sa_module(x2, pos2, batch2, params, B2, tile_n=256)
    jax.block_until_ready(x_out2)
    ref2 = _reference(x2, pos2, batch2, params, B2)
    assert x_out2.shape == (B2, COUT)
    assert jnp.allclose(x_out2, ref2, atol=5e-2, rtol=5e-2), \
        f"case2 max abs err = {jnp.max(jnp.abs(x_out2 - ref2))}"

    print("KERNEL_OK")
</pallas_src>

<mosaic_0001>
module attributes {stable_mosaic.version = 11 : i64} {
  func.func @_global_sa_kernel(%arg0: i32, %arg1: i32, %arg2: memref<1xi32, #tpu.memory_space<smem>>, %arg3: memref<1xi32, #tpu.memory_space<smem>>, %arg4: memref<16x4xf32, #tpu.memory_space<vmem>>, %arg5: memref<16x3xf32, #tpu.memory_space<vmem>>, %arg6: memref<16x1xi32, #tpu.memory_space<vmem>>, %arg7: memref<4x128xbf16, #tpu.memory_space<vmem>>, %arg8: memref<3x128xbf16, #tpu.memory_space<vmem>>, %arg9: memref<1x128xf32, #tpu.memory_space<vmem>>, %arg10: memref<128x128xbf16, #tpu.memory_space<vmem>>, %arg11: memref<1x128xf32, #tpu.memory_space<vmem>>, %arg12: memref<128x128xbf16, #tpu.memory_space<vmem>>, %arg13: memref<1x128xf32, #tpu.memory_space<vmem>>, %arg14: memref<1x8x128xf32, #tpu.memory_space<vmem>>, %arg15: memref<8x128xf32, #tpu.memory_space<vmem>>) attributes {dimension_semantics = [#tpu.dimension_semantics<parallel>, #tpu.dimension_semantics<arbitrary>], iteration_bounds = array<i64: 1, 1>, scalar_prefetch = 2 : i64, scratch_operands = 1 : i64, tpu.core_type = #tpu.core_type<tc>, window_params = [{transform_indices = @transform_0, window_bounds = array<i64: 16, 4>}, {transform_indices = @transform_1, window_bounds = array<i64: 16, 3>}, {transform_indices = @transform_2, window_bounds = array<i64: 16, 1>}, {pipeline_mode = #tpu.pipeline_mode<synchronous>, transform_indices = @transform_3, window_bounds = array<i64: 4, 128>}, {pipeline_mode = #tpu.pipeline_mode<synchronous>, transform_indices = @transform_4, window_bounds = array<i64: 3, 128>}, {pipeline_mode = #tpu.pipeline_mode<synchronous>, transform_indices = @transform_5, window_bounds = array<i64: 1, 128>}, {pipeline_mode = #tpu.pipeline_mode<synchronous>, transform_indices = @transform_6, window_bounds = array<i64: 128, 128>}, {pipeline_mode = #tpu.pipeline_mode<synchronous>, transform_indices = @transform_7, window_bounds = array<i64: 1, 128>}, {pipeline_mode = #tpu.pipeline_mode<synchronous>, transform_indices = @transform_8, window_bounds = array<i64: 128, 128>}, {pipeline_mode = #tpu.pipeline_mode<synchronous>, transform_indices = @transform_9, window_bounds = array<i64: 1, 128>}, {transform_indices = @transform_10, window_bounds = array<i64: 1, 8, 128>}]} {
    %c1_i32 = arith.constant 1 : i32
    %0 = arith.muli %arg0, %c1_i32 : i32
    %1 = arith.addi %0, %arg1 : i32
    %c0_i32 = arith.constant 0 : i32
    %2 = arith.cmpi eq, %arg1, %c0_i32 : i32
    %3 = arith.extui %2 : i1 to i32
    %c0_i32_0 = arith.constant 0 : i32
    %4 = arith.cmpi ne, %3, %c0_i32_0 : i32
    scf.if %4 {
      %cst_36 = arith.constant 0xFF800000 : f32
      %57 = vector.broadcast %cst_36 : f32 to vector<8x128xf32>
      %c0_37 = arith.constant 0 : index
      %c0_38 = arith.constant 0 : index
      %58 = vector.load %arg15[%c0_37, %c0_38] : memref<8x128xf32, #tpu.memory_space<vmem>>, vector<8x128xf32>
      tpu.vector_store %arg15[%c0_37, %c0_38], %57 {strides = array<i32>} : memref<8x128xf32, #tpu.memory_space<vmem>>, vector<8x128xf32>,
    } else {
    }
    %c0 = arith.constant 0 : index
    %c0_1 = arith.constant 0 : index
    %5 = vector.load %arg4[%c0, %c0_1] : memref<16x4xf32, #tpu.memory_space<vmem>>, vector<16x4xf32>
    %6 = arith.truncf %5 : vector<16x4xf32> to vector<16x4xbf16>
    %c0_2 = arith.constant 0 : index
    %c0_3 = arith.constant 0 : index
    %7 = vector.load %arg5[%c0_2, %c0_3] : memref<16x3xf32, #tpu.memory_space<vmem>>, vector<16x3xf32>
    %8 = arith.truncf %7 : vector<16x3xf32> to vector<16x3xbf16>
    %c0_4 = arith.constant 0 : index
    %c0_5 = arith.constant 0 : index
    %9 = vector.load %arg7[%c0_4, %c0_5] : memref<4x128xbf16, #tpu.memory_space<vmem>>, vector<4x128xbf16>
    %cst = arith.constant dense<0.000000e+00> : vector<16x128xf32>
    %10 = tpu.matmul %6, %9, %cst {dimension_numbers = #tpu.dot_dimension_numbers<[1], [0], [0], [1], [0, 0, 1, 1], [], []>} : vector<16x4xbf16>, vector<4x128xbf16>, vector<16x128xf32> -> vector<16x128xf32>
    %c0_6 = arith.constant 0 : index
    %c0_7 = arith.constant 0 : index
    %11 = vector.load %arg8[%c0_6, %c0_7] : memref<3x128xbf16, #tpu.memory_space<vmem>>, vector<3x128xbf16>
    %cst_8 = arith.constant dense<0.000000e+00> : vector<16x128xf32>
    %12 = tpu.matmul %8, %11, %cst_8 {dimension_numbers = #tpu.dot_dimension_numbers<[1], [0], [0], [1], [0, 0, 1, 1], [], []>} : vector<16x3xbf16>, vector<3x128xbf16>, vector<16x128xf32> -> vector<16x128xf32>
    %13 = arith.addf %10, %12 : vector<16x128xf32>
    %c0_9 = arith.constant 0 : index
    %c0_10 = arith.constant 0 : index
    %14 = vector.load %arg9[%c0_9, %c0_10] : memref<1x128xf32, #tpu.memory_space<vmem>>, vector<1x128xf32>
    %15 = vector.broadcast %14 : vector<1x128xf32> to vector<16x128xf32>
    %16 = arith.addf %13, %15 : vector<16x128xf32>
    %cst_11 = arith.constant 0.000000e+00 : f32
    %17 = vector.broadcast %cst_11 : f32 to vector<16x128xf32>
    %18 = arith.maximumf %16, %17 : vector<16x128xf32>
    %19 = arith.truncf %18 : vector<16x128xf32> to vector<16x128xbf16>
    %c0_12 = arith.constant 0 : index
    %c0_13 = arith.constant 0 : index
    %20 = vector.load %arg10[%c0_12, %c0_13] : memref<128x128xbf16, #tpu.memory_space<vmem>>, vector<128x128xbf16>
    %cst_14 = arith.constant dense<0.000000e+00> : vector<16x128xf32>
    %21 = tpu.matmul %19, %20, %cst_14 {dimension_numbers = #tpu.dot_dimension_numbers<[1], [0], [0], [1], [0, 0, 1, 1], [], []>} : vector<16x128xbf16>, vector<128x128xbf16>, vector<16x128xf32> -> vector<16x128xf32>
    %c0_15 = arith.constant 0 : index
    %c0_16 = arith.constant 0 : index
    %22 = vector.load %arg11[%c0_15, %c0_16] : memref<1x128xf32, #tpu.memory_space<vmem>>, vector<1x128xf32>
    %23 = vector.broadcast %22 : vector<1x128xf32> to vector<16x128xf32>
    %24 = arith.addf %21, %23 : vector<16x128xf32>
    %cst_17 = arith.constant 0.000000e+00 : f32
    %25 = vector.broadcast %cst_17 : f32 to vector<16x128xf32>
    %26 = arith.maximumf %24, %25 : vector<16x128xf32>
    %27 = arith.truncf %26 : vector<16x128xf32> to vector<16x128xbf16>
    %c0_18 = arith.constant 0 : index
    %c0_19 = arith.constant 0 : index
    %28 = vector.load %arg12[%c0_18, %c0_19] : memref<128x128xbf16, #tpu.memory_space<vmem>>, vector<128x128xbf16>
    %cst_20 = arith.constant dense<0.000000e+00> : vector<16x128xf32>
    %29 = tpu.matmul %27, %28, %cst_20 {dimension_numbers = #tpu.dot_dimension_numbers<[1], [0], [0], [1], [0, 0, 1, 1], [], []>} : vector<16x128xbf16>, vector<128x128xbf16>, vector<16x128xf32> -> vector<16x128xf32>
    %c0_21 = arith.constant 0 : index
    %c0_22 = arith.constant 0 : index
    %30 = vector.load %arg13[%c0_21, %c0_22] : memref<1x128xf32, #tpu.memory_space<vmem>>, vector<1x128xf32>
    %31 = vector.broadcast %30 : vector<1x128xf32> to vector<16x128xf32>
    %32 = arith.addf %29, %31 : vector<16x128xf32>
    %c16_i32 = arith.constant 16 : i32
    %33 = arith.muli %1, %c16_i32 : i32
    %34 = tpu.iota {dimensions = array<i32: 0>} : vector<16x1xi32>
    %35 = vector.broadcast %33 : i32 to vector<16x1xi32>
    %36 = arith.addi %35, %34 : vector<16x1xi32>
    %c16_i32_23 = arith.constant 16 : i32
    %37 = vector.broadcast %c16_i32_23 : i32 to vector<16x1xi32>
    %38 = arith.cmpi slt, %36, %37 : vector<16x1xi32>
    %c0_24 = arith.constant 0 : index
    %c0_25 = arith.constant 0 : index
    %39 = vector.load %arg6[%c0_24, %c0_25] : memref<16x1xi32, #tpu.memory_space<vmem>>, vector<16x1xi32>
    %40 = arith.index_cast %1 : i32 to index
    %41 = memref.load %arg2[%40] : memref<1xi32, #tpu.memory_space<smem>>
    %42 = arith.index_cast %1 : i32 to index
    %43 = memref.load %arg3[%42] : memref<1xi32, #tpu.memory_space<smem>>
    %c0_i32_26 = arith.constant 0 : i32
    %44 = arith.cmpi sle, %41, %c0_i32_26 : i32
    %c0_i32_27 = arith.constant 0 : i32
    %45 = arith.cmpi sge, %43, %c0_i32_27 : i32
    %46 = arith.andi %44, %45 : i1
    %47 = arith.extui %46 : i1 to i32
    %cst_28 = arith.constant 0xFF800000 : f32
    %c0_i32_29 = arith.constant 0 : i32
    %48 = arith.cmpi ne, %47, %c0_i32_29 : i32
    scf.if %48 {
      %c0_i32_36 = arith.constant 0 : i32
      %57 = vector.broadcast %c0_i32_36 : i32 to vector<16x1xi32>
      %58 = arith.cmpi eq, %39, %57 : vector<16x1xi32>
      %59 = arith.andi %38, %58 : vector<16x1xi1>
      %60 = vector.shape_cast %59 : vector<16x1xi1> to vector<16x1xi1>
      %61 = vector.broadcast %60 : vector<16x1xi1> to vector<16x128xi1>
      %62 = vector.broadcast %cst_28 : f32 to vector<16x128xf32>
      %63 = arith.select %61, %32, %62 : vector<16x128xi1>, vector<16x128xf32>
      %cst_37 = arith.constant dense<0xFF800000> : vector<128xf32>
      %64 = vector.multi_reduction <maximumf>, %63, %cst_37 [0] : vector<16x128xf32> to vector<128xf32>
      %65 = vector.shape_cast %64 : vector<128xf32> to vector<1x128xf32>
      %c0_38 = arith.constant 0 : index
      %c0_39 = arith.constant 0 : index
      %66 = vector.load %arg15[%c0_38, %c0_39] : memref<8x128xf32, #tpu.memory_space<vmem>>, vector<1x128xf32>
      %67 = arith.maximumf %66, %65 : vector<1x128xf32>
      %c0_40 = arith.constant 0 : index
      %c0_41 = arith.constant 0 : index
      %68 = vector.load %arg15[%c0_40, %c0_41] : memref<8x128xf32, #tpu.memory_space<vmem>>, vector<1x128xf32>
      tpu.vector_store %arg15[%c0_40, %c0_41], %67 {strides = array<i32>} : memref<8x128xf32, #tpu.memory_space<vmem>>, vector<1x128xf32>,
    } else {
    }
    %c1_i32_30 = arith.constant 1 : i32
    %49 = arith.cmpi sle, %41, %c1_i32_30 : i32
    %c1_i32_31 = arith.constant 1 : i32
    %50 = arith.cmpi sge, %43, %c1_i32_31 : i32
    %51 = arith.andi %49, %50 : i1
    %52 = arith.extui %51 : i1 to i32
    %cst_32 = arith.constant 0xFF800000 : f32
    %c0_i32_33 = arith.constant 0 : i32
    %53 = arith.cmpi ne, %52, %c0_i32_33 : i32
    scf.if %53 {
      %c1_i32_36 = arith.constant 1 : i32
      %57 = vector.broadcast %c1_i32_36 : i32 to vector<16x1xi32>
      %58 = arith.cmpi eq, %39, %57 : vector<16x1xi32>
      %59 = arith.andi %38, %58 : vector<16x1xi1>
      %60 = vector.shape_cast %59 : vector<16x1xi1> to vector<16x1xi1>
      %61 = vector.broadcast %60 : vector<16x1xi1> to vector<16x128xi1>
      %62 = vector.broadcast %cst_32 : f32 to vector<16x128xf32>
      %63 = arith.select %61, %32, %62 : vector<16x128xi1>, vector<16x128xf32>
      %cst_37 = arith.constant dense<0xFF800000> : vector<128xf32>
      %64 = vector.multi_reduction <maximumf>, %63, %cst_37 [0] : vector<16x128xf32> to vector<128xf32>
      %65 = vector.shape_cast %64 : vector<128xf32> to vector<1x128xf32>
      %c1 = arith.constant 1 : index
      %c0_38 = arith.constant 0 : index
      %66 = vector.load %arg15[%c1, %c0_38] : memref<8x128xf32, #tpu.memory_space<vmem>>, vector<1x128xf32>
      %67 = arith.maximumf %66, %65 : vector<1x128xf32>
      %c1_39 = arith.constant 1 : index
      %c0_40 = arith.constant 0 : index
      %68 = vector.load %arg15[%c1_39, %c0_40] : memref<8x128xf32, #tpu.memory_space<vmem>>, vector<1x128xf32>
      tpu.vector_store %arg15[%c1_39, %c0_40], %67 {strides = array<i32>} : memref<8x128xf32, #tpu.memory_space<vmem>>, vector<1x128xf32>,
    } else {
    }
    %c0_i32_34 = arith.constant 0 : i32
    %54 = arith.cmpi eq, %arg1, %c0_i32_34 : i32
    %55 = arith.extui %54 : i1 to i32
    %c0_i32_35 = arith.constant 0 : i32
    %56 = arith.cmpi ne, %55, %c0_i32_35 : i32
    scf.if %56 {
      %c0_36 = arith.constant 0 : index
      %c0_37 = arith.constant 0 : index
      %57 = vector.load %arg15[%c0_36, %c0_37] : memref<8x128xf32, #tpu.memory_space<vmem>>, vector<8x128xf32>
      %c0_38 = arith.constant 0 : index
      %c0_39 = arith.constant 0 : index
      %c0_40 = arith.constant 0 : index
      %58 = vector.load %arg14[%c0_38, %c0_39, %c0_40] : memref<1x8x128xf32, #tpu.memory_space<vmem>>, vector<1x8x128xf32>
      %59 = vector.shape_cast %58 : vector<1x8x128xf32> to vector<8x128xf32>
      %60 = vector.shape_cast %57 : vector<8x128xf32> to vector<1x8x128xf32>
      tpu.vector_store %arg14[%c0_38, %c0_39, %c0_40], %60 {strides = array<i32>} : memref<1x8x128xf32, #tpu.memory_space<vmem>>, vector<1x8x128xf32>,
    } else {
    }
    return
  }
  func.func @transform_0(%arg0: i32, %arg1: i32, %arg2: memref<1xi32, #tpu.memory_space<smem>>, %arg3: memref<1xi32, #tpu.memory_space<smem>>) -> (i32, i32) {
    %c1_i32 = arith.constant 1 : i32
    %0 = arith.muli %arg0, %c1_i32 : i32
    %1 = arith.addi %0, %arg1 : i32
    %c0_i32 = arith.constant 0 : i32
    %2 = arith.minsi %1, %c0_i32 : i32
    %c0_i32_0 = arith.constant 0 : i32
    %c0_i32_1 = arith.constant 0 : i32
    return %2, %c0_i32_0 : i32, i32
  }
  func.func @transform_1(%arg0: i32, %arg1: i32, %arg2: memref<1xi32, #tpu.memory_space<smem>>, %arg3: memref<1xi32, #tpu.memory_space<smem>>) -> (i32, i32) {
    %c1_i32 = arith.constant 1 : i32
    %0 = arith.muli %arg0, %c1_i32 : i32
    %1 = arith.addi %0, %arg1 : i32
    %c0_i32 = arith.constant 0 : i32
    %2 = arith.minsi %1, %c0_i32 : i32
    %c0_i32_0 = arith.constant 0 : i32
    %c0_i32_1 = arith.constant 0 : i32
    return %2, %c0_i32_0 : i32, i32
  }
  func.func @transform_2(%arg0: i32, %arg1: i32, %arg2: memref<1xi32, #tpu.memory_space<smem>>, %arg3: memref<1xi32, #tpu.memory_space<smem>>) -> (i32, i32) {
    %c1_i32 = arith.constant 1 : i32
    %0 = arith.muli %arg0, %c1_i32 : i32
    %1 = arith.addi %0, %arg1 : i32
    %c0_i32 = arith.constant 0 : i32
    %2 = arith.minsi %1, %c0_i32 : i32
    %c0_i32_0 = arith.constant 0 : i32
    %c0_i32_1 = arith.constant 0 : i32
    return %2, %c0_i32_0 : i32, i32
  }
  func.func @transform_3(%arg0: i32, %arg1: i32, %arg2: memref<1xi32, #tpu.memory_space<smem>>, %arg3: memref<1xi32, #tpu.memory_space<smem>>) -> (i32, i32) {
    %c0_i32 = arith.constant 0 : i32
    %c0_i32_0 = arith.constant 0 : i32
    %c0_i32_1 = arith.constant 0 : i32
    return %c0_i32, %c0_i32_0 : i32, i32
  }
  func.func @transform_4(%arg0: i32, %arg1: i32, %arg2: memref<1xi32, #tpu.memory_space<smem>>, %arg3: memref<1xi32, #tpu.memory_space<smem>>) -> (i32, i32) {
    %c0_i32 = arith.constant 0 : i32
    %c0_i32_0 = arith.constant 0 : i32
    %c0_i32_1 = arith.constant 0 : i32
    return %c0_i32, %c0_i32_0 : i32, i32
  }
  func.func @transform_5(%arg0: i32, %arg1: i32, %arg2: memref<1xi32, #tpu.memory_space<smem>>, %arg3: memref<1xi32, #tpu.memory_space<smem>>) -> (i32, i32) {
    %c0_i32 = arith.constant 0 : i32
    %c0_i32_0 = arith.constant 0 : i32
    %c0_i32_1 = arith.constant 0 : i32
    return %c0_i32, %c0_i32_0 : i32, i32
  }
  func.func @transform_6(%arg0: i32, %arg1: i32, %arg2: memref<1xi32, #tpu.memory_space<smem>>, %arg3: memref<1xi32, #tpu.memory_space<smem>>) -> (i32, i32) {
    %c0_i32 = arith.constant 0 : i32
    %c0_i32_0 = arith.constant 0 : i32
    %c0_i32_1 = arith.constant 0 : i32
    return %c0_i32, %c0_i32_0 : i32, i32
  }
  func.func @transform_7(%arg0: i32, %arg1: i32, %arg2: memref<1xi32, #tpu.memory_space<smem>>, %arg3: memref<1xi32, #tpu.memory_space<smem>>) -> (i32, i32) {
    %c0_i32 = arith.constant 0 : i32
    %c0_i32_0 = arith.constant 0 : i32
    %c0_i32_1 = arith.constant 0 : i32
    return %c0_i32, %c0_i32_0 : i32, i32
  }
  func.func @transform_8(%arg0: i32, %arg1: i32, %arg2: memref<1xi32, #tpu.memory_space<smem>>, %arg3: memref<1xi32, #tpu.memory_space<smem>>) -> (i32, i32) {
    %c0_i32 = arith.constant 0 : i32
    %c0_i32_0 = arith.constant 0 : i32
    %c0_i32_1 = arith.constant 0 : i32
    return %c0_i32, %c0_i32_0 : i32, i32
  }
  func.func @transform_9(%arg0: i32, %arg1: i32, %arg2: memref<1xi32, #tpu.memory_space<smem>>, %arg3: memref<1xi32, #tpu.memory_space<smem>>) -> (i32, i32) {
    %c0_i32 = arith.constant 0 : i32
    %c0_i32_0 = arith.constant 0 : i32
    %c0_i32_1 = arith.constant 0 : i32
    return %c0_i32, %c0_i32_0 : i32, i32
  }
  func.func @transform_10(%arg0: i32, %arg1: i32, %arg2: memref<1xi32, #tpu.memory_space<smem>>, %arg3: memref<1xi32, #tpu.memory_space<smem>>) -> (i32, i32, i32) {
    %c0_i32 = arith.constant 0 : i32
    %c0_i32_0 = arith.constant 0 : i32
    %c0_i32_1 = arith.constant 0 : i32
    return %arg0, %c0_i32, %c0_i32_0 : i32, i32, i32
  }
}

</mosaic_0001>

<llo_original>
// kernel: tpu_custom_call.1
$region0: #{tpu_custom_call.1}
  #allocation0 [shape = 'u32[]', space=smem, size = 0x4, offset = 0x4, fixed_abs, tag = 'smem constant byte address 0x4 - core index']
  #allocation1 [shape = 'u32[144,128]{1,0:T(1,128)}', space=vmem, size = 0x12000, scoped, tag = 'internal scratch']
  #allocation2 [shape = 'f32[8,128]{1,0:T(8,128)}', space=vmem, size = 0x1000, scoped, tag = 'scratch operand']
  #allocation3 [shape = 's32[1]{0}', space=sflag, size = 0x4, scoped, tag = 'scoped memory for tpu_custom_call.1']
  #allocation4 [shape = 's32[1]{0:T(128)S(6)}', space=smem, size = 0x200, scoped, tag = 'prefetched SMEM operand 0']
  #allocation5 [shape = 's32[1]{0:T(128)S(6)}', space=smem, size = 0x200, scoped, tag = 'prefetched SMEM operand 1']
  %s0 = inlined_call_operand.<no memory space> [shape: s32[1], index: 0, kind: input, shape index: {}]
  %s1 = inlined_call_operand.<no memory space> [shape: s32[1], index: 1, kind: input, shape index: {}]
  %s2 = inlined_call_operand.vmem [shape: f32[16,4], index: 2, kind: input, shape index: {}]
  %s3 = inlined_call_operand.vmem [shape: f32[16,3], index: 3, kind: input, shape index: {}]
  %s4 = inlined_call_operand.vmem [shape: s32[16,1], index: 4, kind: input, shape index: {}]
  %s5 = inlined_call_operand.vmem [shape: bf16[4,128], index: 5, kind: input, shape index: {}]
  %s6 = inlined_call_operand.vmem [shape: bf16[3,128], index: 6, kind: input, shape index: {}]
  %s7 = inlined_call_operand.vmem [shape: f32[1,128], index: 7, kind: input, shape index: {}]
  %s8 = inlined_call_operand.vmem [shape: bf16[128,128], index: 8, kind: input, shape index: {}]
  %s9 = inlined_call_operand.vmem [shape: f32[1,128], index: 9, kind: input, shape index: {}]
  %s10 = inlined_call_operand.hbm [shape: bf16[128,128], index: 10, kind: input, shape index: {}]
  %s11 = inlined_call_operand.vmem [shape: f32[1,128], index: 11, kind: input, shape index: {}]
  %s12 = inlined_call_operand.hbm [shape: f32[1,8,128], index: 12, kind: output, shape index: {}]
  %s13 = sld [smem:[#allocation0]]
  $region70: #{tpu_custom_call.1} parent=0
    _
  %s15 = ssub.s32 1, %s13
  %s16 = scalar_select 0, %s15, %s13
  %17 = sst [smem:[#allocation4]] %s0
  %18 = sst [smem:[#allocation5]] %s1
  $region1: #{tpu_custom_call.1} parent=0
    #allocation6 [shape = 'u8[32768]{0}', space=vmem, size = 0x8000, scoped, tag = 'input window, operand 10, single buffered']
    #allocation7 [shape = 's32[1]{0}', space=sflag, size = 0x4, scoped, tag = 'scoped memory for tpu_custom_call.1']
    #allocation8 [shape = 's32[1]{0}', space=sflag, size = 0x4, scoped, tag = 'scoped memory for tpu_custom_call.1']
    #allocation9 [shape = 'u8[4096]{0}', space=vmem, size = 0x1000, scoped, tag = 'output window, operand 0, single buffered']
    %19 = vsyncpa [#allocation7], 0
    %20 = vsyncpa [#allocation8], 0
    // Predicated region
    $region2: #{tpu_custom_call.1} parent=1 // pred_check
      _
    $region3: #{tpu_custom_call.1} parent=1 // pred_check_branch
      %22 = sbr.rel (0) target = $region5
    $region4: #{tpu_custom_call.1} parent=1 // pred_region
      %s23 = sadd.s32 0, 0
      %p24 = scmp.lt.s32.totalorder %s23, 0
      %s25 = scalar_select %p24, %s23, 0
      %s26 = smul.u32 2, %s25
      %p27 = scmp.lt.s32.totalorder %s26, 1
      %s28 = scalar_select %p27, %s26, 1
      %s29 = smul.addr %s28, 8
      %s30 = scalar_lea.vmem %s2, %s29
      %s31 = sadd.s32 0, 0
      %p32 = scmp.lt.s32.totalorder %s31, 0
      %s33 = scalar_select %p32, %s31, 0
      %s34 = smul.u32 2, %s33
    $region5: #{tpu_custom_call.1} parent=1 // pred_fallthru
      _
    // Predicated region
    $region6: #{tpu_custom_call.1} parent=1 // pred_check
      _
    $region7: #{tpu_custom_call.1} parent=1 // pred_check_branch
      %36 = sbr.rel (0) target = $region9
    $region8: #{tpu_custom_call.1} parent=1 // pred_region
      %s37 = sadd.s32 0, 0
      %p38 = scmp.lt.s32.totalorder %s37, 0
      %s39 = scalar_select %p38, %s37, 0
      %s40 = smul.u32 2, %s39
      %p41 = scmp.lt.s32.totalorder %s40, 1
      %s42 = scalar_select %p41, %s40, 1
      %s43 = smul.addr %s42, 8
      %s44 = scalar_lea.vmem %s3, %s43
      %s45 = sadd.s32 0, 0
      %p46 = scmp.lt.s32.totalorder %s45, 0
      %s47 = scalar_select %p46, %s45, 0
      %s48 = smul.u32 2, %s47
    $region9: #{tpu_custom_call.1} parent=1 // pred_fallthru
      _
    // Predicated region
    $region10: #{tpu_custom_call.1} parent=1 // pred_check
      _
    $region11: #{tpu_custom_call.1} parent=1 // pred_check_branch
      %50 = sbr.rel (0) target = $region13
    $region12: #{tpu_custom_call.1} parent=1 // pred_region
      %s51 = sadd.s32 0, 0
      %p52 = scmp.lt.s32.totalorder %s51, 0
      %s53 = scalar_select %p52, %s51, 0
      %s54 = smul.u32 2, %s53
      %p55 = scmp.lt.s32.totalorder %s54, 1
      %s56 = scalar_select %p55, %s54, 1
      %s57 = smul.addr %s56, 8
      %s58 = scalar_lea.vmem %s4, %s57
      %s59 = sadd.s32 0, 0
      %p60 = scmp.lt.s32.totalorder %s59, 0
      %s61 = scalar_select %p60, %s59, 0
      %s62 = smul.u32 2, %s61
    $region13: #{tpu_custom_call.1} parent=1 // pred_fallthru
      _
    // Predicated region
    $region14: #{tpu_custom_call.1} parent=1 // pred_check
      _
    $region15: #{tpu_custom_call.1} parent=1 // pred_check_branch
      %64 = sbr.rel (0) target = $region17
    $region16: #{tpu_custom_call.1} parent=1 // pred_region
      _
    $region17: #{tpu_custom_call.1} parent=1 // pred_fallthru
      _
    // Predicated region
    $region18: #{tpu_custom_call.1} parent=1 // pred_check
      _
    $region19: #{tpu_custom_call.1} parent=1 // pred_check_branch
      %66 = sbr.rel (0) target = $region21
    $region20: #{tpu_custom_call.1} parent=1 // pred_region
      _
    $region21: #{tpu_custom_call.1} parent=1 // pred_fallthru
      _
    // Predicated region
    $region22: #{tpu_custom_call.1} parent=1 // pred_check
      _
    $region23: #{tpu_custom_call.1} parent=1 // pred_check_branch
      %68 = sbr.rel (0) target = $region25
    $region24: #{tpu_custom_call.1} parent=1 // pred_region
      _
    $region25: #{tpu_custom_call.1} parent=1 // pred_fallthru
      _
    // Predicated region
    $region26: #{tpu_custom_call.1} parent=1 // pred_check
      _
    $region27: #{tpu_custom_call.1} parent=1 // pred_check_branch
      %70 = sbr.rel (0) target = $region29
    $region28: #{tpu_custom_call.1} parent=1 // pred_region
      _
    $region29: #{tpu_custom_call.1} parent=1 // pred_fallthru
      _
    // Predicated region
    $region30: #{tpu_custom_call.1} parent=1 // pred_check
      _
    $region31: #{tpu_custom_call.1} parent=1 // pred_check_branch
      %72 = sbr.rel (0) target = $region33
    $region32: #{tpu_custom_call.1} parent=1 // pred_region
      _
    $region33: #{tpu_custom_call.1} parent=1 // pred_fallthru
      _
    // Predicated region
    $region34: #{tpu_custom_call.1} parent=1 // pred_check
      _
    $region35: #{tpu_custom_call.1} parent=1 // pred_check_branch
      %74 = sbr.rel (0) target = $region37
    $region36: #{tpu_custom_call.1} parent=1 // pred_region
      %s76 = ssub.s32 1024, 1024
      %77 = vsyncadd [#allocation7], %s76
      %s78 = sshll.u32 [#allocation6], 4
      %s79 = int_to_ptr.vmem [resolvable:$true] %s78
      %84 = dma.hbm_to_vmem [thread:$0]  %s10, 1024, %s79, [#allocation7], 64, 64, 4
    $region37: #{tpu_custom_call.1} parent=1 // pred_fallthru
      _
    // Predicated region
    $region38: #{tpu_custom_call.1} parent=1 // pred_check
      _
    $region39: #{tpu_custom_call.1} parent=1 // pred_check_branch
      %86 = sbr.rel (0) target = $region41
    $region40: #{tpu_custom_call.1} parent=1 // pred_region
      _
    $region41: #{tpu_custom_call.1} parent=1 // pred_fallthru
      _
    // Predicated region
    $region42: #{tpu_custom_call.1} parent=1 // pred_check
      _
    $region43: #{tpu_custom_call.1} parent=1 // pred_check_branch
      %88 = sbr.rel (0) target = $region45
    $region44: #{tpu_custom_call.1} parent=1 // pred_region
      %89 = dma.done [#allocation7], 1024
    $region45: #{tpu_custom_call.1} parent=1 // pred_fallthru
      _
    %s90 = sadd.s32 0, 0
    %p91 = scmp.lt.s32.totalorder %s90, 0
    %s92 = scalar_select %p91, %s90, 0
    %s93 = smul.u32 2, %s92
    %p94 = scmp.lt.s32.totalorder %s93, 1
    %s95 = scalar_select %p94, %s93, 1
    %s96 = smul.addr %s95, 8
    %s97 = scalar_lea.vmem %s2, %s96
    %s98 = sadd.s32 0, 0
    %p99 = scmp.lt.s32.totalorder %s98, 0
    %s100 = scalar_select %p99, %s98, 0
    %s101 = smul.u32 2, %s100
    %p102 = scmp.lt.s32.totalorder %s101, 1
    %s103 = scalar_select %p102, %s101, 1
    %s104 = smul.addr %s103, 8
    %s105 = scalar_lea.vmem %s3, %s104
    %s106 = sadd.s32 0, 0
    %p107 = scmp.lt.s32.totalorder %s106, 0
    %s108 = scalar_select %p107, %s106, 0
    %s109 = smul.u32 2, %s108
    %p110 = scmp.lt.s32.totalorder %s109, 1
    %s111 = scalar_select %p110, %s109, 1
    %s112 = smul.addr %s111, 8
    %s113 = scalar_lea.vmem %s4, %s112
    %s114 = sadd.s32 0, 0
    %p115 = scmp.lt.s32.totalorder %s114, 0
    %s116 = scalar_select %p115, %s114, 0
    %s117 = smul.u32 2, %s116
    %p118 = scmp.lt.s32.totalorder %s117, 1
    %s119 = scalar_select %p118, %s117, 1
    %s120 = smul.addr %s119, 8
    %s121 = scalar_lea.vmem %s2, %s120
    %s122 = sadd.s32 0, 0
    %p123 = scmp.lt.s32.totalorder %s122, 0
    %s124 = scalar_select %p123, %s122, 0
    %s125 = smul.u32 2, %s124
    %s126 = sadd.s32 0, 0
    %p127 = scmp.lt.s32.totalorder %s126, 0
    %s128 = scalar_select %p127, %s126, 0
    %s129 = smul.u32 2, %s128
    %p130 = scmp.lt.s32.totalorder %s129, 1
    %s131 = scalar_select %p130, %s129, 1
    %s132 = smul.addr %s131, 8
    %s133 = scalar_lea.vmem %s3, %s132
    %s134 = sadd.s32 0, 0
    %p135 = scmp.lt.s32.totalorder %s134, 0
    %s136 = scalar_select %p135, %s134, 0
    %s137 = smul.u32 2, %s136
    %s138 = sadd.s32 0, 0
    %p139 = scmp.lt.s32.totalorder %s138, 0
    %s140 = scalar_select %p139, %s138, 0
    %s141 = smul.u32 2, %s140
    %p142 = scmp.lt.s32.totalorder %s141, 1
    %s143 = scalar_select %p142, %s141, 1
    %s144 = smul.addr %s143, 8
    %s145 = scalar_lea.vmem %s4, %s144
    %s146 = sadd.s32 0, 0
    %p147 = scmp.lt.s32.totalorder %s146, 0
    %s148 = scalar_select %p147, %s146, 0
    %s149 = smul.u32 2, %s148
    %s151 = sadd.s32 0, 0
    %p152 = scmp.eq.s32.totalorder 0, 0
    // Predicated region
    $region46: #{tpu_custom_call.1} parent=1 // pred_check
      %p153 = pneg %p152
    $region47: #{tpu_custom_call.1} parent=1 // pred_check_branch
      %155 = sbr.rel (%p153) target = $region49
    $region48: #{tpu_custom_call.1} parent=1 // pred_region
      %156 = vst [vmem:[#allocation2] sm:$0xff] -inf
    $region49: #{tpu_custom_call.1} parent=1 // pred_fallthru
      _
    %v157 = vld [vmem:[%s121] sm:$0xff]
    %v158 = vld [vmem:[%s121 + $0x8] sm:$0xff]
    %v159 = vpack.c.bf16 %v158, %v157
    %v160 = vld [vmem:[%s133] sm:$0xff]
    %v161 = vld [vmem:[%s133 + $0x8] sm:$0xff]
    %v162 = vpack.c.bf16 %v161, %v160
    %v163 = vld [vmem:[%s5] sm:$0x3]
    %v164 = vld [vmem:[%s6] sm:$0x3]
    %vm165 = vcmask 23552
    %v167 = vsel %vm165, %v162, 0
    %vm169 = vcmask 1040384
    %vm170 = vcmask 1041408
    %v171 = vsel %vm169, 4294967295, 65535
    %v172 = vsel %vm170, %v171, 0
    %v174 = vand.u32 %v164, %v172
    %176 = vmatprep.subr.bf16.mxu0 0
    %177 = vmatpush1.bf16.msra.mxu0 0
    %178 = vmatprep.subr.bf16.mxu0 0
    %179 = vmatpush1.bf16.msra.mxu0 0
    %180 = vmatprep.subr.bf16.mxu0 0
    %181 = vmatpush1.bf16.msra.mxu0 0
    %182 = vmatprep.subr.bf16.mxu0 0
    %183 = vmatpush1.bf16.msra.mxu0 0
    %184 = vmatprep.subr.bf16.mxu0 0
    %185 = vmatpush1.bf16.msra.mxu0 0
    %186 = vmatprep.subr.bf16.mxu0 0
    %187 = vmatpush1.bf16.msra.mxu0 0
    %188 = vmatprep.subr.bf16.mxu0 0
    %189 = vmatpush1.bf16.msra.mxu0 0
    %190 = vmatprep.subr.bf16.mxu0 0
    %191 = vmatpush1.bf16.msra.mxu0 %v174
    %192 = vmatprep.subr.bf16.mxu0 0
    %193 = vmatpush2.bf16.msra.mxu0 0
    %194 = vmatprep.subr.bf16.mxu0 0
    %195 = vmatpush2.bf16.msra.mxu0 0
    %196 = vmatprep.subr.bf16.mxu0 0
    %197 = vmatpush2.bf16.msra.mxu0 0
    %198 = vmatprep.subr.bf16.mxu0 0
    %199 = vmatpush2.bf16.msra.mxu0 0
    %200 = vmatprep.subr.bf16.mxu0 0
    %201 = vmatpush2.bf16.msra.mxu0 0
    %202 = vmatprep.subr.bf16.mxu0 0
    %203 = vmatpush2.bf16.msra.mxu0 0
    %204 = vmatprep.subr.bf16.mxu0 0
    %205 = vmatpush2.bf16.msra.mxu0 0
    %206 = vmatprep.subr.bf16.mxu0 0
    %207 = vmatpush2.bf16.msra.mxu0 0
    %208 = vmatprep.mubr.bf16.mxu0 0
    %209 = vmatmul.mubr.bf16.gmra.mxu0 %v167
    %v210 = vpop.f32.mrf.mxu0
    %v211 = vadd.f32 0.0, %v210
    %v212 = vpop.f32.mrf.mxu0
    %v213 = vpop.f32.mrf.mxu0
    %v214 = vadd.f32 0.0, %v213
    %v215 = vpop.f32.mrf.mxu0
    %216 = vdwg.mxu0
    %vm217 = vcmask 31744
    %v219 = vsel %vm217, %v159, 0
    %v222 = vsel %vm170, %v163, 0
    %224 = vmatprep.subr.bf16.mxu0 0
    %225 = vmatpush1.bf16.msra.mxu0 0
    %226 = vmatprep.subr.bf16.mxu0 0
    %227 = vmatpush1.bf16.msra.mxu0 0
    %228 = vmatprep.subr.bf16.mxu0 0
    %229 = vmatpush1.bf16.msra.mxu0 0
    %230 = vmatprep.subr.bf16.mxu0 0
    %231 = vmatpush1.bf16.msra.mxu0 0
    %232 = vmatprep.subr.bf16.mxu0 0
    %233 = vmatpush1.bf16.msra.mxu0 0
    %234 = vmatprep.subr.bf16.mxu0 0
    %235 = vmatpush1.bf16.msra.mxu0 0
    %236 = vmatprep.subr.bf16.mxu0 0
    %237 = vmatpush1.bf16.msra.mxu0 0
    %238 = vmatprep.subr.bf16.mxu0 0
    %239 = vmatpush1.bf16.msra.mxu0 %v222
    %240 = vmatprep.subr.bf16.mxu0 0
    %241 = vmatpush2.bf16.msra.mxu0 0
    %242 = vmatprep.subr.bf16.mxu0 0
    %243 = vmatpush2.bf16.msra.mxu0 0
    %244 = vmatprep.subr.bf16.mxu0 0
    %245 = vmatpush2.bf16.msra.mxu0 0
    %246 = vmatprep.subr.bf16.mxu0 0
    %247 = vmatpush2.bf16.msra.mxu0 0
    %248 = vmatprep.subr.bf16.mxu0 0
    %249 = vmatpush2.bf16.msra.mxu0 0
    %250 = vmatprep.subr.bf16.mxu0 0
    %251 = vmatpush2.bf16.msra.mxu0 0
    %252 = vmatprep.subr.bf16.mxu0 0
    %253 = vmatpush2.bf16.msra.mxu0 0
    %254 = vmatprep.subr.bf16.mxu0 0
    %255 = vmatpush2.bf16.msra.mxu0 0
    %256 = vmatprep.mubr.bf16.mxu0 0
    %257 = vmatmul.mubr.bf16.gmra.mxu0 %v219
    %v258 = vpop.f32.mrf.mxu0
    %v259 = vadd.f32 %v211, %v258
    %v260 = vpop.f32.mrf.mxu0
    %v261 = vpop.f32.mrf.mxu0
    %v262 = vadd.f32 %v214, %v261
    %v263 = vpop.f32.mrf.mxu0
    %264 = vdwg.mxu0
    %v265 = vld [vmem:[%s7] sm:$0x1]
    %v267 = vlaneseq
    %v268 = vshrl.u32 %v267, 7
    %v269 = vsub.s32 0, %v268
    %v270 = vrot.slane %v265, %v269
    %v272 = vadd.f32 %v259, %v270
    %v273 = vadd.f32 %v262, %v270
    %v274 = vmax.f32 %v272, 0.0
    %v275 = vmax.f32 %v273, 0.0
    %v276 = vpack.c.bf16 %v275, %v274
    %v277 = vld [vmem:[%s8] sm:$0xf]
    %v278 = vld [vmem:[%s8 + $0x4] sm:$0xf]
    %v279 = vld [vmem:[%s8 + $0x8] sm:$0xf]
    %v280 = vld [vmem:[%s8 + $0xc] sm:$0xf]
    %v281 = vld [vmem:[%s8 + $0x10] sm:$0xf]
    %v282 = vld [vmem:[%s8 + $0x14] sm:$0xf]
    %v283 = vld [vmem:[%s8 + $0x18] sm:$0xf]
    %v284 = vld [vmem:[%s8 + $0x1c] sm:$0xf]
    %v285 = vld [vmem:[%s8 + $0x20] sm:$0xf]
    %v286 = vld [vmem:[%s8 + $0x24] sm:$0xf]
    %v287 = vld [vmem:[%s8 + $0x28] sm:$0xf]
    %v288 = vld [vmem:[%s8 + $0x2c] sm:$0xf]
    %v289 = vld [vmem:[%s8 + $0x30] sm:$0xf]
    %v290 = vld [vmem:[%s8 + $0x34] sm:$0xf]
    %v291 = vld [vmem:[%s8 + $0x38] sm:$0xf]
    %v292 = vld [vmem:[%s8 + $0x3c] sm:$0xf]
    %v293 = vld [vmem:[%s9] sm:$0x1]
    %v295 = vlaneseq
    %v296 = vshrl.u32 %v295, 7
    %v297 = vsub.s32 0, %v296
    %v298 = vrot.slane %v293, %v297
    %v316 = vunpack.c.l.b16 %v277
    %v317 = vunpack.c.l.b16 %v278
    %v318 = vunpack.c.l.b16 %v279
    %v319 = vunpack.c.l.b16 %v280
    %v320 = vunpack.c.l.b16 %v281
    %v321 = vunpack.c.l.b16 %v282
    %v322 = vunpack.c.l.b16 %v283
    %v323 = vunpack.c.l.b16 %v284
    %v324 = vunpack.c.l.b16 %v285
    %v325 = vunpack.c.l.b16 %v286
    %v326 = vunpack.c.l.b16 %v287
    %v327 = vunpack.c.l.b16 %v288
    %v328 = vunpack.c.l.b16 %v289
    %v329 = vunpack.c.l.b16 %v290
    %v330 = vunpack.c.l.b16 %v291
    %v331 = vunpack.c.l.b16 %v292
    %v332 = vpack.c.b16 %v317, %v316
    %v333 = vpack.c.b16 %v319, %v318
    %v334 = vpack.c.b16 %v321, %v320
    %v335 = vpack.c.b16 %v323, %v322
    %v336 = vpack.c.b16 %v325, %v324
    %v337 = vpack.c.b16 %v327, %v326
    %v338 = vpack.c.b16 %v329, %v328
    %v339 = vpack.c.b16 %v331, %v330
    %348 = vmatprep.subr.bf16.mxu0 0
    %349 = vmatpush1.bf16.msra.mxu0 %v339
    %350 = vmatprep.subr.bf16.mxu0 0
    %351 = vmatpush1.bf16.msra.mxu0 %v338
    %352 = vmatprep.subr.bf16.mxu0 0
    %353 = vmatpush1.bf16.msra.mxu0 %v337
    %354 = vmatprep.subr.bf16.mxu0 0
    %355 = vmatpush1.bf16.msra.mxu0 %v336
    %356 = vmatprep.subr.bf16.mxu0 0
    %357 = vmatpush1.bf16.msra.mxu0 %v335
    %358 = vmatprep.subr.bf16.mxu0 0
    %359 = vmatpush1.bf16.msra.mxu0 %v334
    %360 = vmatprep.subr.bf16.mxu0 0
    %361 = vmatpush1.bf16.msra.mxu0 %v333
    %362 = vmatprep.subr.bf16.mxu0 0
    %363 = vmatpush1.bf16.msra.mxu0 %v332
    %364 = vmatprep.subr.bf16.mxu0 0
    %365 = vmatpush2.bf16.msra.mxu0 0
    %366 = vmatprep.subr.bf16.mxu0 0
    %367 = vmatpush2.bf16.msra.mxu0 0
    %368 = vmatprep.subr.bf16.mxu0 0
    %369 = vmatpush2.bf16.msra.mxu0 0
    %370 = vmatprep.subr.bf16.mxu0 0
    %371 = vmatpush2.bf16.msra.mxu0 0
    %372 = vmatprep.subr.bf16.mxu0 0
    %373 = vmatpush2.bf16.msra.mxu0 0
    %374 = vmatprep.subr.bf16.mxu0 0
    %375 = vmatpush2.bf16.msra.mxu0 0
    %376 = vmatprep.subr.bf16.mxu0 0
    %377 = vmatpush2.bf16.msra.mxu0 0
    %378 = vmatprep.subr.bf16.mxu0 0
    %379 = vmatpush2.bf16.msra.mxu0 0
    %380 = vmatprep.mubr.bf16.mxu0 0
    %381 = vmatmul.mubr.bf16.gmra.mxu0 %v276
    %v382 = vpop.f32.mrf.mxu0
    %v383 = vadd.f32 %v298, %v382
    %v384 = vpop.f32.mrf.mxu0
    %v385 = vpop.f32.mrf.mxu0
    %v386 = vadd.f32 %v298, %v385
    %v387 = vpop.f32.mrf.mxu0
    %388 = vdwg.mxu0
    %v389 = vmax.f32 %v383, 0.0
    %v390 = vmax.f32 %v386, 0.0
    %v391 = vpack.c.bf16 %v390, %v389
    %v392 = vld [vmem:[#allocation6] sm:$0xf]
    %v393 = vld [vmem:[#allocation6 + $0x4] sm:$0xf]
    %v394 = vld [vmem:[#allocation6 + $0x8] sm:$0xf]
    %v395 = vld [vmem:[#allocation6 + $0xc] sm:$0xf]
    %v396 = vld [vmem:[#allocation6 + $0x10] sm:$0xf]
    %v397 = vld [vmem:[#allocation6 + $0x14] sm:$0xf]
    %v398 = vld [vmem:[#allocation6 + $0x18] sm:$0xf]
    %v399 = vld [vmem:[#allocation6 + $0x1c] sm:$0xf]
    %v400 = vld [vmem:[#allocation6 + $0x20] sm:$0xf]
    %v401 = vld [vmem:[#allocation6 + $0x24] sm:$0xf]
    %v402 = vld [vmem:[#allocation6 + $0x28] sm:$0xf]
    %v403 = vld [vmem:[#allocation6 + $0x2c] sm:$0xf]
    %v404 = vld [vmem:[#allocation6 + $0x30] sm:$0xf]
    %v405 = vld [vmem:[#allocation6 + $0x34] sm:$0xf]
    %v406 = vld [vmem:[#allocation6 + $0x38] sm:$0xf]
    %v407 = vld [vmem:[#allocation6 + $0x3c] sm:$0xf]
    %v408 = vld [vmem:[%s11] sm:$0x1]
    %v410 = vlaneseq
    %v411 = vshrl.u32 %v410, 7
    %v412 = vsub.s32 0, %v411
    %v413 = vrot.slane %v408, %v412
    %v431 = vunpack.c.l.b16 %v392
    %v432 = vunpack.c.l.b16 %v393
    %v433 = vunpack.c.l.b16 %v394
    %v434 = vunpack.c.l.b16 %v395
    %v435 = vunpack.c.l.b16 %v396
    %v436 = vunpack.c.l.b16 %v397
    %v437 = vunpack.c.l.b16 %v398
    %v438 = vunpack.c.l.b16 %v399
    %v439 = vunpack.c.l.b16 %v400
    %v440 = vunpack.c.l.b16 %v401
    %v441 = vunpack.c.l.b16 %v402
    %v442 = vunpack.c.l.b16 %v403
    %v443 = vunpack.c.l.b16 %v404
    %v444 = vunpack.c.l.b16 %v405
    %v445 = vunpack.c.l.b16 %v406
    %v446 = vunpack.c.l.b16 %v407
    %v447 = vpack.c.b16 %v432, %v431
    %v448 = vpack.c.b16 %v434, %v433
    %v449 = vpack.c.b16 %v436, %v435
    %v450 = vpack.c.b16 %v438, %v437
    %v451 = vpack.c.b16 %v440, %v439
    %v452 = vpack.c.b16 %v442, %v441
    %v453 = vpack.c.b16 %v444, %v443
    %v454 = vpack.c.b16 %v446, %v445
    %463 = vmatprep.subr.bf16.mxu0 0
    %464 = vmatpush1.bf16.msra.mxu0 %v454
    %465 = vmatprep.subr.bf16.mxu0 0
    %466 = vmatpush1.bf16.msra.mxu0 %v453
    %467 = vmatprep.subr.bf16.mxu0 0
    %468 = vmatpush1.bf16.msra.mxu0 %v452
    %469 = vmatprep.subr.bf16.mxu0 0
    %470 = vmatpush1.bf16.msra.mxu0 %v451
    %471 = vmatprep.subr.bf16.mxu0 0
    %472 = vmatpush1.bf16.msra.mxu0 %v450
    %473 = vmatprep.subr.bf16.mxu0 0
    %474 = vmatpush1.bf16.msra.mxu0 %v449
    %475 = vmatprep.subr.bf16.mxu0 0
    %476 = vmatpush1.bf16.msra.mxu0 %v448
    %477 = vmatprep.subr.bf16.mxu0 0
    %478 = vmatpush1.bf16.msra.mxu0 %v447
    %479 = vmatprep.subr.bf16.mxu0 0
    %480 = vmatpush2.bf16.msra.mxu0 0
    %481 = vmatprep.subr.bf16.mxu0 0
    %482 = vmatpush2.bf16.msra.mxu0 0
    %483 = vmatprep.subr.bf16.mxu0 0
    %484 = vmatpush2.bf16.msra.mxu0 0
    %485 = vmatprep.subr.bf16.mxu0 0
    %486 = vmatpush2.bf16.msra.mxu0 0
    %487 = vmatprep.subr.bf16.mxu0 0
    %488 = vmatpush2.bf16.msra.mxu0 0
    %489 = vmatprep.subr.bf16.mxu0 0
    %490 = vmatpush2.bf16.msra.mxu0 0
    %491 = vmatprep.subr.bf16.mxu0 0
    %492 = vmatpush2.bf16.msra.mxu0 0
    %493 = vmatprep.subr.bf16.mxu0 0
    %494 = vmatpush2.bf16.msra.mxu0 0
    %495 = vmatprep.mubr.bf16.mxu0 0
    %496 = vmatmul.mubr.bf16.gmra.mxu0 %v391
    %v497 = vpop.f32.mrf.mxu0
    %v498 = vadd.f32 %v413, %v497
    %v499 = vpop.f32.mrf.mxu0
    %v500 = vpop.f32.mrf.mxu0
    %v501 = vadd.f32 %v413, %v500
    %v502 = vpop.f32.mrf.mxu0
    %503 = vdwg.mxu0
    %s504 = smul.u32 %s151, 16
    %v505 = vlaneseq
    %v506 = vshrl.u32 %v505, 7
    %v507 = vadd.s32 %v506, 8
    %v508 = vstv %s504
    %v509 = vadd.s32 %v508, %v506
    %v510 = vadd.s32 %v508, %v507
    %vm511 = vcmp.lt.s32.totalorder %v509, 16
    %vm512 = vcmp.lt.s32.totalorder %v510, 16
    %v513 = vld [vmem:[%s145] sm:$0xff]
    %v514 = vld [vmem:[%s145 + $0x8] sm:$0xff]
    %s515 = sld [smem:[#allocation4 + %s151]]
    %s516 = sld [smem:[#allocation5 + %s151]]
    %p517 = scmp.le.s32.totalorder %s515, 0
    %p518 = scmp.ge.s32.totalorder %s516, 0
    %p519 = pnand %p517, %p518
    %p520 = pneg %p519
    // Predicated region
    $region50: #{tpu_custom_call.1} parent=1 // pred_check
      _
    $region51: #{tpu_custom_call.1} parent=1 // pred_check_branch
      %522 = sbr.rel (%p519) target = $region53
    $region52: #{tpu_custom_call.1} parent=1 // pred_region
      %vm523 = vcmp.eq.s32.totalorder %v513, 0
      %vm524 = vcmp.eq.s32.totalorder %v514, 0
      %vm525 = vmand %vm511, %vm523
      %vm526 = vmand %vm512, %vm524
      %v527 = vsel %vm525, 1, 0
      %v528 = vsel %vm526, 1, 0
      %529 = vset.pattern.permute.xlu0 0
      %530 = vperm.xlu0 %529, %v527
      %v531 = vpop.permute.xlu0 %530
      %532 = vset.pattern.permute.xlu0 0
      %533 = vperm.xlu0 %532, %v528
      %v534 = vpop.permute.xlu0 %533
      %vm535 = vcmp.eq.s32.totalorder %v531, 1
      %vm536 = vcmp.eq.s32.totalorder %v534, 1
      %v537 = vsel %vm535, %v498, -inf
      %v538 = vsel %vm536, %v501, -inf
      %v539 = vmax.f32 %v537, %v538
      %v540 = vrot.slane %v539, 4
      %v541 = vmax.f32 %v539, %v540
      %v542 = vrot.slane %v541, 2
      %v543 = vmax.f32 %v541, %v542
      %v544 = vrot.slane %v543, 1
      %v545 = vmax.f32 %v543, %v544
      %v546 = vld [vmem:[#allocation2] sm:$0x1]
      %v547 = vmax.f32 %v546, %v545
      %548 = vst [vmem:[#allocation2] sm:$0x1] %v547
    $region53: #{tpu_custom_call.1} parent=1 // pred_fallthru
      _
    %p549 = scmp.le.s32.totalorder %s515, 1
    %p550 = scmp.ge.s32.totalorder %s516, 1
    %p551 = pnand %p549, %p550
    %p552 = pneg %p551
    // Predicated region
    $region54: #{tpu_custom_call.1} parent=1 // pred_check
      _
    $region55: #{tpu_custom_call.1} parent=1 // pred_check_branch
      %554 = sbr.rel (%p551) target = $region57
    $region56: #{tpu_custom_call.1} parent=1 // pred_region
      %vm555 = vcmp.eq.s32.totalorder %v513, 1
      %vm556 = vcmp.eq.s32.totalorder %v514, 1
      %vm557 = vmand %vm511, %vm555
      %vm558 = vmand %vm512, %vm556
      %v559 = vsel %vm557, 1, 0
      %v560 = vsel %vm558, 1, 0
      %561 = vset.pattern.permute.xlu0 0
      %562 = vperm.xlu0 %561, %v559
      %v563 = vpop.permute.xlu0 %562
      %564 = vset.pattern.permute.xlu0 0
      %565 = vperm.xlu0 %564, %v560
      %v566 = vpop.permute.xlu0 %565
      %vm567 = vcmp.eq.s32.totalorder %v563, 1
      %vm568 = vcmp.eq.s32.totalorder %v566, 1
      %v569 = vsel %vm567, %v498, -inf
      %v570 = vsel %vm568, %v501, -inf
      %v571 = vmax.f32 %v569, %v570
      %v572 = vrot.slane %v571, 4
      %v573 = vmax.f32 %v571, %v572
      %v574 = vrot.slane %v573, 2
      %v575 = vmax.f32 %v573, %v574
      %v576 = vrot.slane %v575, 1
      %v577 = vmax.f32 %v575, %v576
      %v578 = vld [vmem:[#allocation2 + $0x1] sm:$0x1]
      %v579 = vmax.f32 %v578, %v577
      %580 = vst [vmem:[#allocation2 + $0x1] sm:$0x1] %v579
    $region57: #{tpu_custom_call.1} parent=1 // pred_fallthru
      _
    // Predicated region
    $region58: #{tpu_custom_call.1} parent=1 // pred_check
      %p581 = pneg %p152
    $region59: #{tpu_custom_call.1} parent=1 // pred_check_branch
      %583 = sbr.rel (%p581) target = $region61
    $region60: #{tpu_custom_call.1} parent=1 // pred_region
      %v584 = vld [vmem:[#allocation2] sm:$0xff]
      %585 = vst [vmem:[#allocation9] sm:$0xff] %v584
    $region61: #{tpu_custom_call.1} parent=1 // pred_fallthru
      _
    // Predicated region
    $region62: #{tpu_custom_call.1} parent=1 // pred_check
      _
    $region63: #{tpu_custom_call.1} parent=1 // pred_check_branch
      %587 = sbr.rel (0) target = $region65
    $region64: #{tpu_custom_call.1} parent=1 // pred_region
      %s589 = ssub.s32 128, 128
      %590 = vsyncadd [#allocation8], %s589
      %s592 = sshll.u32 [#allocation9], 4
      %s593 = int_to_ptr.vmem [resolvable:$true] %s592
      %595 = dma.vmem_to_hbm [thread:$0]  %s593, 128, %s12, [#allocation8]
    $region65: #{tpu_custom_call.1} parent=1 // pred_fallthru
      _
    // Predicated region
    $region66: #{tpu_custom_call.1} parent=1 // pred_check
      _
    $region67: #{tpu_custom_call.1} parent=1 // pred_check_branch
      %597 = sbr.rel (0) target = $region69
    $region68: #{tpu_custom_call.1} parent=1 // pred_region
      %598 = dma.done [#allocation8], 128
    $region69: #{tpu_custom_call.1} parent=1 // pred_fallthru
      _
    %599 = vsyncpa [#allocation7], 1
    %600 = vsyncpa [#allocation8], 1

</llo_original>
